<compile_context>
chip_gen: v6e
topology: v6e:2x2x1
jax: 0.10.0
libtpu: 0.0.40
codegen_flags: <defaults>
</compile_context>

<pallas_src>
import functools

import jax
import jax.numpy as jnp
from jax.experimental import pallas as pl
from jax.experimental.pallas import tpu as pltpu


def _fused_encoder_kernel(n_layers, compute_dtype, *refs):
    """Fused y = relu(...relu(relu(x@w0+b0)@w1+b1)...@wL+bL) on one batch tile.

    refs = (x_ref, w0, b0, w1, b1, ..., o_ref).  Intermediate activations stay
    in vregs/VMEM managed by the compiler — they are never written to HBM.
    """
    x_ref = refs[0]
    o_ref = refs[-1]
    h = x_ref[...].astype(jnp.float32)
    for layer in range(n_layers):
        w_ref = refs[1 + 2 * layer]
        b_ref = refs[2 + 2 * layer]
        y = jnp.dot(h.astype(compute_dtype), w_ref[...],
                    preferred_element_type=jnp.float32)          # MXU, f32 acc
        y = y + b_ref[...].astype(jnp.float32)                   # (1, N) broadcast
        h = jnp.maximum(y, 0.0)                                  # ReLU in f32
    o_ref[...] = h.astype(o_ref.dtype)


def autoencoder_forward(x, params, *, tile_m=512, compute_dtype=jnp.bfloat16):
    """Fused forward pass of the whole encoder stack in a single pallas_call."""
    M, K_in = x.shape
    n_layers = len(params)
    N_out = params[-1][0].shape[1]

    # Batch tile: as large as reasonable; full batch if it is small.
    tile_m = min(tile_m, M)
    if tile_m != M:
        tile_m = max(8, (tile_m // 8) * 8)
    grid = (pl.cdiv(M, tile_m),)

    # x tile marches over the batch; weights/bias stay resident (block (0,0)).
    in_specs = [pl.BlockSpec((tile_m, K_in), lambda i: (i, 0))]
    flat_params = []
    for w, b in params:
        K, N = w.shape
        assert b.shape == (1, N)
        in_specs.append(pl.BlockSpec((K, N), lambda i: (0, 0)))
        in_specs.append(pl.BlockSpec((1, N), lambda i: (0, 0)))
        flat_params.append(w.astype(compute_dtype))   # bf16 weights for the MXU
        flat_params.append(b)                          # bias stays f32
    out_spec = pl.BlockSpec((tile_m, N_out), lambda i: (i, 0))

    # VMEM budget: double-buffered activation/output tiles + resident params
    # + a few live f32 intermediates; headroom; capped at 64 MiB (v7x VMEM).
    w_itemsize = jnp.dtype(compute_dtype).itemsize
    act_bytes = 2 * tile_m * (K_in + N_out) * 4
    param_bytes = sum(2 * (w.size * w_itemsize + b.size * 4) for w, b in params)
    max_width = max([K_in] + [w.shape[1] for w, _ in params])
    inter_bytes = 4 * tile_m * max_width * 4
    needed = int(1.5 * (act_bytes + param_bytes + inter_bytes)) + (2 << 20)
    vmem_limit = min(max(needed, 32 << 20), 64 << 20)

    kernel = functools.partial(_fused_encoder_kernel, n_layers, compute_dtype)
    return pl.pallas_call(
        kernel,
        out_shape=jax.ShapeDtypeStruct((M, N_out), x.dtype),
        grid=grid,
        in_specs=in_specs,
        out_specs=out_spec,
        compiler_params=pltpu.CompilerParams(
            dimension_semantics=("parallel",),      # batch tiles are independent
            vmem_limit_bytes=vmem_limit,
        ),
    )(x, *flat_params)


autoencoder_forward_jit = jax.jit(
    autoencoder_forward, static_argnames=("tile_m", "compute_dtype"))


def init_autoencoder_params(key, input_dim, feature_dim, dims, dtype=jnp.float32):
    """Deterministic init mimicking nn.Linear default (uniform +-1/sqrt(fan_in))."""
    layer_dims = [input_dim] + list(dims) + [feature_dim]
    params = []
    for i in range(len(layer_dims) - 1):
        fan_in, fan_out = layer_dims[i], layer_dims[i + 1]
        key, kw, kb = jax.random.split(key, 3)
        bound = 1.0 / jnp.sqrt(fan_in)
        w = jax.random.uniform(kw, (fan_in, fan_out), dtype, -bound, bound)
        b = jax.random.uniform(kb, (1, fan_out), dtype, -bound, bound)
        params.append((w, b))
    return params


def _reference_forward(x, params, compute_dtype=jnp.bfloat16):
    """Plain-JAX reference mirroring the kernel's bf16-operand / f32-accum math."""
    h = x.astype(jnp.float32)
    for w, b in params:
        y = jnp.dot(h.astype(compute_dtype), w.astype(compute_dtype),
                    preferred_element_type=jnp.float32)
        h = jnp.maximum(y + b.astype(jnp.float32), 0.0)
    return h.astype(x.dtype)


if __name__ == "__main__":
    input_dim = 32
    feature_dim = 16
    dims = [64, 32]

    key = jax.random.PRNGKey(0)
    key, kx_small, kx_big = jax.random.split(key, 3)
    params = init_autoencoder_params(key, input_dim, feature_dim, dims)

    ok = True

    # Small shape consistent with the module (single tile, grid=(1,)).
    x_small = jax.random.normal(kx_small, (8, input_dim), jnp.float32)
    out_small = jax.block_until_ready(autoencoder_forward_jit(x_small, params))
    ref_small = _reference_forward(x_small, params)
    ok &= out_small.shape == (8, feature_dim)
    ok &= bool(jnp.allclose(out_small, ref_small, atol=1e-2, rtol=1e-2))

    # Larger batch to exercise the M-grid pipeline (grid=(2,), tile_m=256).
    x_big = jax.random.normal(kx_big, (512, input_dim), jnp.float32)
    out_big = jax.block_until_ready(
        autoencoder_forward_jit(x_big, params, tile_m=256))
    ref_big = _reference_forward(x_big, params)
    ok &= out_big.shape == (512, feature_dim)
    ok &= bool(jnp.allclose(out_big, ref_big, atol=1e-2, rtol=1e-2))

    if ok:
        print("KERNEL_OK")
    else:
        raise SystemExit("mismatch vs reference")
</pallas_src>

<mosaic_0001>
module attributes {stable_mosaic.version = 11 : i64} {
  func.func @_fused_encoder_kernel(%arg0: i32, %arg1: memref<8x32xf32, #tpu.memory_space<vmem>>, %arg2: memref<32x64xbf16, #tpu.memory_space<vmem>>, %arg3: memref<1x64xf32, #tpu.memory_space<vmem>>, %arg4: memref<64x32xbf16, #tpu.memory_space<vmem>>, %arg5: memref<1x32xf32, #tpu.memory_space<vmem>>, %arg6: memref<32x16xbf16, #tpu.memory_space<vmem>>, %arg7: memref<1x16xf32, #tpu.memory_space<vmem>>, %arg8: memref<8x16xf32, #tpu.memory_space<vmem>>) attributes {dimension_semantics = [#tpu.dimension_semantics<parallel>], iteration_bounds = array<i64: 1>, scalar_prefetch = 0 : i64, scratch_operands = 0 : i64, tpu.core_type = #tpu.core_type<tc>, window_params = [{transform_indices = @transform_0, window_bounds = array<i64: 8, 32>}, {pipeline_mode = #tpu.pipeline_mode<synchronous>, transform_indices = @transform_1, window_bounds = array<i64: 32, 64>}, {pipeline_mode = #tpu.pipeline_mode<synchronous>, transform_indices = @transform_2, window_bounds = array<i64: 1, 64>}, {pipeline_mode = #tpu.pipeline_mode<synchronous>, transform_indices = @transform_3, window_bounds = array<i64: 64, 32>}, {pipeline_mode = #tpu.pipeline_mode<synchronous>, transform_indices = @transform_4, window_bounds = array<i64: 1, 32>}, {pipeline_mode = #tpu.pipeline_mode<synchronous>, transform_indices = @transform_5, window_bounds = array<i64: 32, 16>}, {pipeline_mode = #tpu.pipeline_mode<synchronous>, transform_indices = @transform_6, window_bounds = array<i64: 1, 16>}, {transform_indices = @transform_7, window_bounds = array<i64: 8, 16>}]} {
    %c0 = arith.constant 0 : index
    %c0_0 = arith.constant 0 : index
    %0 = vector.load %arg1[%c0, %c0_0] : memref<8x32xf32, #tpu.memory_space<vmem>>, vector<8x32xf32>
    %1 = arith.truncf %0 : vector<8x32xf32> to vector<8x32xbf16>
    %c0_1 = arith.constant 0 : index
    %c0_2 = arith.constant 0 : index
    %2 = vector.load %arg2[%c0_1, %c0_2] : memref<32x64xbf16, #tpu.memory_space<vmem>>, vector<32x64xbf16>
    %cst = arith.constant dense<0.000000e+00> : vector<8x64xf32>
    %3 = tpu.matmul %1, %2, %cst {dimension_numbers = #tpu.dot_dimension_numbers<[1], [0], [0], [1], [0, 0, 1, 1], [], []>} : vector<8x32xbf16>, vector<32x64xbf16>, vector<8x64xf32> -> vector<8x64xf32>
    %c0_3 = arith.constant 0 : index
    %c0_4 = arith.constant 0 : index
    %4 = vector.load %arg3[%c0_3, %c0_4] : memref<1x64xf32, #tpu.memory_space<vmem>>, vector<1x64xf32>
    %5 = vector.broadcast %4 : vector<1x64xf32> to vector<8x64xf32>
    %6 = arith.addf %3, %5 : vector<8x64xf32>
    %cst_5 = arith.constant 0.000000e+00 : f32
    %7 = vector.broadcast %cst_5 : f32 to vector<8x64xf32>
    %8 = arith.maximumf %6, %7 : vector<8x64xf32>
    %9 = arith.truncf %8 : vector<8x64xf32> to vector<8x64xbf16>
    %c0_6 = arith.constant 0 : index
    %c0_7 = arith.constant 0 : index
    %10 = vector.load %arg4[%c0_6, %c0_7] : memref<64x32xbf16, #tpu.memory_space<vmem>>, vector<64x32xbf16>
    %cst_8 = arith.constant dense<0.000000e+00> : vector<8x32xf32>
    %11 = tpu.matmul %9, %10, %cst_8 {dimension_numbers = #tpu.dot_dimension_numbers<[1], [0], [0], [1], [0, 0, 1, 1], [], []>} : vector<8x64xbf16>, vector<64x32xbf16>, vector<8x32xf32> -> vector<8x32xf32>
    %c0_9 = arith.constant 0 : index
    %c0_10 = arith.constant 0 : index
    %12 = vector.load %arg5[%c0_9, %c0_10] : memref<1x32xf32, #tpu.memory_space<vmem>>, vector<1x32xf32>
    %13 = vector.broadcast %12 : vector<1x32xf32> to vector<8x32xf32>
    %14 = arith.addf %11, %13 : vector<8x32xf32>
    %cst_11 = arith.constant 0.000000e+00 : f32
    %15 = vector.broadcast %cst_11 : f32 to vector<8x32xf32>
    %16 = arith.maximumf %14, %15 : vector<8x32xf32>
    %17 = arith.truncf %16 : vector<8x32xf32> to vector<8x32xbf16>
    %c0_12 = arith.constant 0 : index
    %c0_13 = arith.constant 0 : index
    %18 = vector.load %arg6[%c0_12, %c0_13] : memref<32x16xbf16, #tpu.memory_space<vmem>>, vector<32x16xbf16>
    %cst_14 = arith.constant dense<0.000000e+00> : vector<8x16xf32>
    %19 = tpu.matmul %17, %18, %cst_14 {dimension_numbers = #tpu.dot_dimension_numbers<[1], [0], [0], [1], [0, 0, 1, 1], [], []>} : vector<8x32xbf16>, vector<32x16xbf16>, vector<8x16xf32> -> vector<8x16xf32>
    %c0_15 = arith.constant 0 : index
    %c0_16 = arith.constant 0 : index
    %20 = vector.load %arg7[%c0_15, %c0_16] : memref<1x16xf32, #tpu.memory_space<vmem>>, vector<1x16xf32>
    %21 = vector.broadcast %20 : vector<1x16xf32> to vector<8x16xf32>
    %22 = arith.addf %19, %21 : vector<8x16xf32>
    %cst_17 = arith.constant 0.000000e+00 : f32
    %23 = vector.broadcast %cst_17 : f32 to vector<8x16xf32>
    %24 = arith.maximumf %22, %23 : vector<8x16xf32>
    %c0_18 = arith.constant 0 : index
    %c0_19 = arith.constant 0 : index
    %25 = vector.load %arg8[%c0_18, %c0_19] : memref<8x16xf32, #tpu.memory_space<vmem>>, vector<8x16xf32>
    tpu.vector_store %arg8[%c0_18, %c0_19], %24 {strides = array<i32>} : memref<8x16xf32, #tpu.memory_space<vmem>>, vector<8x16xf32>,
    return
  }
  func.func @transform_0(%arg0: i32) -> (i32, i32) {
    %c0_i32 = arith.constant 0 : i32
    %c0_i32_0 = arith.constant 0 : i32
    return %arg0, %c0_i32 : i32, i32
  }
  func.func @transform_1(%arg0: i32) -> (i32, i32) {
    %c0_i32 = arith.constant 0 : i32
    %c0_i32_0 = arith.constant 0 : i32
    %c0_i32_1 = arith.constant 0 : i32
    return %c0_i32, %c0_i32_0 : i32, i32
  }
  func.func @transform_2(%arg0: i32) -> (i32, i32) {
    %c0_i32 = arith.constant 0 : i32
    %c0_i32_0 = arith.constant 0 : i32
    %c0_i32_1 = arith.constant 0 : i32
    return %c0_i32, %c0_i32_0 : i32, i32
  }
  func.func @transform_3(%arg0: i32) -> (i32, i32) {
    %c0_i32 = arith.constant 0 : i32
    %c0_i32_0 = arith.constant 0 : i32
    %c0_i32_1 = arith.constant 0 : i32
    return %c0_i32, %c0_i32_0 : i32, i32
  }
  func.func @transform_4(%arg0: i32) -> (i32, i32) {
    %c0_i32 = arith.constant 0 : i32
    %c0_i32_0 = arith.constant 0 : i32
    %c0_i32_1 = arith.constant 0 : i32
    return %c0_i32, %c0_i32_0 : i32, i32
  }
  func.func @transform_5(%arg0: i32) -> (i32, i32) {
    %c0_i32 = arith.constant 0 : i32
    %c0_i32_0 = arith.constant 0 : i32
    %c0_i32_1 = arith.constant 0 : i32
    return %c0_i32, %c0_i32_0 : i32, i32
  }
  func.func @transform_6(%arg0: i32) -> (i32, i32) {
    %c0_i32 = arith.constant 0 : i32
    %c0_i32_0 = arith.constant 0 : i32
    %c0_i32_1 = arith.constant 0 : i32
    return %c0_i32, %c0_i32_0 : i32, i32
  }
  func.func @transform_7(%arg0: i32) -> (i32, i32) {
    %c0_i32 = arith.constant 0 : i32
    %c0_i32_0 = arith.constant 0 : i32
    return %arg0, %c0_i32 : i32, i32
  }
}

</mosaic_0001>

<llo_original>
// kernel: autoencoder_forward.1
$region0: #{autoencoder_forward.1}
  #allocation0 [shape = 'u32[]', space=smem, size = 0x4, offset = 0x4, fixed_abs, tag = 'smem constant byte address 0x4 - core index']
  #allocation1 [shape = 'u32[144,128]{1,0:T(1,128)}', space=vmem, size = 0x12000, scoped, tag = 'internal scratch']
  %s0 = inlined_call_operand.vmem [shape: f32[8,32], index: 0, kind: input, shape index: {}]
  %s1 = inlined_call_operand.vmem [shape: bf16[32,64], index: 1, kind: input, shape index: {}]
  %s2 = inlined_call_operand.vmem [shape: f32[1,64], index: 2, kind: input, shape index: {}]
  %s3 = inlined_call_operand.vmem [shape: bf16[64,32], index: 3, kind: input, shape index: {}]
  %s4 = inlined_call_operand.vmem [shape: f32[1,32], index: 4, kind: input, shape index: {}]
  %s5 = inlined_call_operand.vmem [shape: bf16[32,16], index: 5, kind: input, shape index: {}]
  %s6 = inlined_call_operand.vmem [shape: f32[1,16], index: 6, kind: input, shape index: {}]
  %s7 = inlined_call_operand.hbm [shape: f32[8,16], index: 7, kind: output, shape index: {}]
  %s8 = sld [smem:[#allocation0]]
  $region38: #{autoencoder_forward.1} parent=0
    _
  %s10 = ssub.s32 1, %s8
  %s11 = scalar_select 0, %s10, %s8
  $region1: #{autoencoder_forward.1} parent=0
    #allocation2 [shape = 'u8[4096]{0}', space=vmem, size = 0x1000, scoped, tag = 'output window, operand 0, single buffered']
    #allocation3 [shape = 's32[1]{0}', space=sflag, size = 0x4, scoped, tag = 'scoped memory for autoencoder_forward.1']
    %12 = vsyncpa [#allocation3], 0
    // Predicated region
    $region2: #{autoencoder_forward.1} parent=1 // pred_check
      _
    $region3: #{autoencoder_forward.1} parent=1 // pred_check_branch
      %14 = sbr.rel (0) target = $region5
    $region4: #{autoencoder_forward.1} parent=1 // pred_region
      _
    $region5: #{autoencoder_forward.1} parent=1 // pred_fallthru
      _
    // Predicated region
    $region6: #{autoencoder_forward.1} parent=1 // pred_check
      _
    $region7: #{autoencoder_forward.1} parent=1 // pred_check_branch
      %16 = sbr.rel (0) target = $region9
    $region8: #{autoencoder_forward.1} parent=1 // pred_region
      _
    $region9: #{autoencoder_forward.1} parent=1 // pred_fallthru
      _
    // Predicated region
    $region10: #{autoencoder_forward.1} parent=1 // pred_check
      _
    $region11: #{autoencoder_forward.1} parent=1 // pred_check_branch
      %18 = sbr.rel (0) target = $region13
    $region12: #{autoencoder_forward.1} parent=1 // pred_region
      _
    $region13: #{autoencoder_forward.1} parent=1 // pred_fallthru
      _
    // Predicated region
    $region14: #{autoencoder_forward.1} parent=1 // pred_check
      _
    $region15: #{autoencoder_forward.1} parent=1 // pred_check_branch
      %20 = sbr.rel (0) target = $region17
    $region16: #{autoencoder_forward.1} parent=1 // pred_region
      _
    $region17: #{autoencoder_forward.1} parent=1 // pred_fallthru
      _
    // Predicated region
    $region18: #{autoencoder_forward.1} parent=1 // pred_check
      _
    $region19: #{autoencoder_forward.1} parent=1 // pred_check_branch
      %22 = sbr.rel (0) target = $region21
    $region20: #{autoencoder_forward.1} parent=1 // pred_region
      _
    $region21: #{autoencoder_forward.1} parent=1 // pred_fallthru
      _
    // Predicated region
    $region22: #{autoencoder_forward.1} parent=1 // pred_check
      _
    $region23: #{autoencoder_forward.1} parent=1 // pred_check_branch
      %24 = sbr.rel (0) target = $region25
    $region24: #{autoencoder_forward.1} parent=1 // pred_region
      _
    $region25: #{autoencoder_forward.1} parent=1 // pred_fallthru
      _
    // Predicated region
    $region26: #{autoencoder_forward.1} parent=1 // pred_check
      _
    $region27: #{autoencoder_forward.1} parent=1 // pred_check_branch
      %26 = sbr.rel (0) target = $region29
    $region28: #{autoencoder_forward.1} parent=1 // pred_region
      _
    $region29: #{autoencoder_forward.1} parent=1 // pred_fallthru
      _
    %v28 = vld [vmem:[%s0] sm:$0xff]
    %v29 = vpack.c.bf16 %v28, %v28
    %v30 = vld [vmem:[%s1] sm:$0xf]
    %v31 = vld [vmem:[%s1 + $0x4] sm:$0xf]
    %v32 = vld [vmem:[%s1 + $0x8] sm:$0xf]
    %v33 = vld [vmem:[%s1 + $0xc] sm:$0xf]
    %v34 = vld [vmem:[%s2] sm:$0x1]
    %v36 = vlaneseq
    %v37 = vshrl.u32 %v36, 7
    %v38 = vsub.s32 0, %v37
    %v39 = vrot.slane %v34, %v38
    %v45 = vunpack.c.l.b16 %v30
    %v46 = vunpack.c.l.b16 %v31
    %v47 = vunpack.c.l.b16 %v32
    %v48 = vunpack.c.l.b16 %v33
    %v49 = vpack.c.b16 %v46, %v45
    %v50 = vpack.c.b16 %v48, %v47
    %vm53 = vcmask 261120
    %v55 = vsel %vm53, %v29, 0
    %57 = vmatprep.subr.bf16.mxu0 0
    %58 = vmatpush1.bf16.msra.mxu0 0
    %59 = vmatprep.subr.bf16.mxu0 0
    %60 = vmatpush1.bf16.msra.mxu0 0
    %61 = vmatprep.subr.bf16.mxu0 0
    %62 = vmatpush1.bf16.msra.mxu0 0
    %63 = vmatprep.subr.bf16.mxu0 0
    %64 = vmatpush1.bf16.msra.mxu0 0
    %65 = vmatprep.subr.bf16.mxu0 0
    %66 = vmatpush1.bf16.msra.mxu0 0
    %67 = vmatprep.subr.bf16.mxu0 0
    %68 = vmatpush1.bf16.msra.mxu0 0
    %69 = vmatprep.subr.bf16.mxu0 0
    %70 = vmatpush1.bf16.msra.mxu0 %v50
    %71 = vmatprep.subr.bf16.mxu0 0
    %72 = vmatpush1.bf16.msra.mxu0 %v49
    %73 = vmatprep.subr.bf16.mxu0 0
    %74 = vmatpush2.bf16.msra.mxu0 0
    %75 = vmatprep.subr.bf16.mxu0 0
    %76 = vmatpush2.bf16.msra.mxu0 0
    %77 = vmatprep.subr.bf16.mxu0 0
    %78 = vmatpush2.bf16.msra.mxu0 0
    %79 = vmatprep.subr.bf16.mxu0 0
    %80 = vmatpush2.bf16.msra.mxu0 0
    %81 = vmatprep.subr.bf16.mxu0 0
    %82 = vmatpush2.bf16.msra.mxu0 0
    %83 = vmatprep.subr.bf16.mxu0 0
    %84 = vmatpush2.bf16.msra.mxu0 0
    %85 = vmatprep.subr.bf16.mxu0 0
    %86 = vmatpush2.bf16.msra.mxu0 0
    %87 = vmatprep.subr.bf16.mxu0 0
    %88 = vmatpush2.bf16.msra.mxu0 0
    %89 = vmatprep.mubr.bf16.mxu0 0
    %90 = vmatmul.mubr.bf16.gmra.mxu0 %v55
    %v91 = vpop.f32.mrf.mxu0
    %v92 = vadd.f32 %v39, %v91
    %v93 = vpop.f32.mrf.mxu0
    %v94 = vpop.f32.mrf.mxu0
    %v95 = vpop.f32.mrf.mxu0
    %96 = vdwg.mxu0
    %v97 = vmax.f32 %v92, 0.0
    %v98 = vpack.c.bf16 %v97, %v97
    %v99 = vld [vmem:[%s3] sm:$0xf]
    %v100 = vld [vmem:[%s3 + $0x4] sm:$0xf]
    %v101 = vld [vmem:[%s3 + $0x8] sm:$0xf]
    %v102 = vld [vmem:[%s3 + $0xc] sm:$0xf]
    %v103 = vld [vmem:[%s3 + $0x10] sm:$0xf]
    %v104 = vld [vmem:[%s3 + $0x14] sm:$0xf]
    %v105 = vld [vmem:[%s3 + $0x18] sm:$0xf]
    %v106 = vld [vmem:[%s3 + $0x1c] sm:$0xf]
    %v107 = vld [vmem:[%s4] sm:$0x1]
    %v109 = vlaneseq
    %v110 = vshrl.u32 %v109, 7
    %v111 = vsub.s32 0, %v110
    %v112 = vrot.slane %v107, %v111
    %v122 = vunpack.c.l.b16 %v99
    %v123 = vunpack.c.l.b16 %v100
    %v124 = vunpack.c.l.b16 %v101
    %v125 = vunpack.c.l.b16 %v102
    %v126 = vunpack.c.l.b16 %v103
    %v127 = vunpack.c.l.b16 %v104
    %v128 = vunpack.c.l.b16 %v105
    %v129 = vunpack.c.l.b16 %v106
    %v130 = vpack.c.b16 %v123, %v122
    %v131 = vpack.c.b16 %v125, %v124
    %v132 = vpack.c.b16 %v127, %v126
    %v133 = vpack.c.b16 %v129, %v128
    %vm138 = vcmask 523264
    %v140 = vsel %vm138, %v98, 0
    %142 = vmatprep.subr.bf16.mxu0 0
    %143 = vmatpush1.bf16.msra.mxu0 0
    %144 = vmatprep.subr.bf16.mxu0 0
    %145 = vmatpush1.bf16.msra.mxu0 0
    %146 = vmatprep.subr.bf16.mxu0 0
    %147 = vmatpush1.bf16.msra.mxu0 0
    %148 = vmatprep.subr.bf16.mxu0 0
    %149 = vmatpush1.bf16.msra.mxu0 0
    %150 = vmatprep.subr.bf16.mxu0 0
    %151 = vmatpush1.bf16.msra.mxu0 %v133
    %152 = vmatprep.subr.bf16.mxu0 0
    %153 = vmatpush1.bf16.msra.mxu0 %v132
    %154 = vmatprep.subr.bf16.mxu0 0
    %155 = vmatpush1.bf16.msra.mxu0 %v131
    %156 = vmatprep.subr.bf16.mxu0 0
    %157 = vmatpush1.bf16.msra.mxu0 %v130
    %158 = vmatprep.subr.bf16.mxu0 0
    %159 = vmatpush2.bf16.msra.mxu0 0
    %160 = vmatprep.subr.bf16.mxu0 0
    %161 = vmatpush2.bf16.msra.mxu0 0
    %162 = vmatprep.subr.bf16.mxu0 0
    %163 = vmatpush2.bf16.msra.mxu0 0
    %164 = vmatprep.subr.bf16.mxu0 0
    %165 = vmatpush2.bf16.msra.mxu0 0
    %166 = vmatprep.subr.bf16.mxu0 0
    %167 = vmatpush2.bf16.msra.mxu0 0
    %168 = vmatprep.subr.bf16.mxu0 0
    %169 = vmatpush2.bf16.msra.mxu0 0
    %170 = vmatprep.subr.bf16.mxu0 0
    %171 = vmatpush2.bf16.msra.mxu0 0
    %172 = vmatprep.subr.bf16.mxu0 0
    %173 = vmatpush2.bf16.msra.mxu0 0
    %174 = vmatprep.mubr.bf16.mxu0 0
    %175 = vmatmul.mubr.bf16.gmra.mxu0 %v140
    %v176 = vpop.f32.mrf.mxu0
    %v177 = vadd.f32 %v112, %v176
    %v178 = vpop.f32.mrf.mxu0
    %v179 = vpop.f32.mrf.mxu0
    %v180 = vpop.f32.mrf.mxu0
    %181 = vdwg.mxu0
    %v182 = vmax.f32 %v177, 0.0
    %v183 = vpack.c.bf16 %v182, %v182
    %v184 = vld [vmem:[%s5] sm:$0xf]
    %v185 = vld [vmem:[%s5 + $0x4] sm:$0xf]
    %v186 = vld [vmem:[%s5 + $0x8] sm:$0xf]
    %v187 = vld [vmem:[%s5 + $0xc] sm:$0xf]
    %v188 = vld [vmem:[%s6] sm:$0x1]
    %v190 = vlaneseq
    %v191 = vshrl.u32 %v190, 7
    %v192 = vsub.s32 0, %v191
    %v193 = vrot.slane %v188, %v192
    %v199 = vunpack.c.l.b16 %v184
    %v200 = vunpack.c.l.b16 %v185
    %v201 = vunpack.c.l.b16 %v186
    %v202 = vunpack.c.l.b16 %v187
    %v203 = vpack.c.b16 %v200, %v199
    %v204 = vpack.c.b16 %v202, %v201
    %v208 = vsel %vm53, %v183, 0
    %210 = vmatprep.subr.bf16.mxu0 0
    %211 = vmatpush1.bf16.msra.mxu0 0
    %212 = vmatprep.subr.bf16.mxu0 0
    %213 = vmatpush1.bf16.msra.mxu0 0
    %214 = vmatprep.subr.bf16.mxu0 0
    %215 = vmatpush1.bf16.msra.mxu0 0
    %216 = vmatprep.subr.bf16.mxu0 0
    %217 = vmatpush1.bf16.msra.mxu0 0
    %218 = vmatprep.subr.bf16.mxu0 0
    %219 = vmatpush1.bf16.msra.mxu0 0
    %220 = vmatprep.subr.bf16.mxu0 0
    %221 = vmatpush1.bf16.msra.mxu0 0
    %222 = vmatprep.subr.bf16.mxu0 0
    %223 = vmatpush1.bf16.msra.mxu0 %v204
    %224 = vmatprep.subr.bf16.mxu0 0
    %225 = vmatpush1.bf16.msra.mxu0 %v203
    %226 = vmatprep.subr.bf16.mxu0 0
    %227 = vmatpush2.bf16.msra.mxu0 0
    %228 = vmatprep.subr.bf16.mxu0 0
    %229 = vmatpush2.bf16.msra.mxu0 0
    %230 = vmatprep.subr.bf16.mxu0 0
    %231 = vmatpush2.bf16.msra.mxu0 0
    %232 = vmatprep.subr.bf16.mxu0 0
    %233 = vmatpush2.bf16.msra.mxu0 0
    %234 = vmatprep.subr.bf16.mxu0 0
    %235 = vmatpush2.bf16.msra.mxu0 0
    %236 = vmatprep.subr.bf16.mxu0 0
    %237 = vmatpush2.bf16.msra.mxu0 0
    %238 = vmatprep.subr.bf16.mxu0 0
    %239 = vmatpush2.bf16.msra.mxu0 0
    %240 = vmatprep.subr.bf16.mxu0 0
    %241 = vmatpush2.bf16.msra.mxu0 0
    %242 = vmatprep.mubr.bf16.mxu0 0
    %243 = vmatmul.mubr.bf16.gmra.mxu0 %v208
    %v244 = vpop.f32.mrf.mxu0
    %v245 = vadd.f32 %v193, %v244
    %v246 = vpop.f32.mrf.mxu0
    %v247 = vpop.f32.mrf.mxu0
    %v248 = vpop.f32.mrf.mxu0
    %249 = vdwg.mxu0
    %v250 = vmax.f32 %v245, 0.0
    %vm251 = vcmask 130048
    %252 = vst.msk [vmem:[#allocation2] sm:$0xff] %vm251, %v250
    // Predicated region
    $region30: #{autoencoder_forward.1} parent=1 // pred_check
      _
    $region31: #{autoencoder_forward.1} parent=1 // pred_check_branch
      %254 = sbr.rel (0) target = $region33
    $region32: #{autoencoder_forward.1} parent=1 // pred_region
      %s256 = ssub.s32 128, 128
      %257 = vsyncadd [#allocation3], %s256
      %s259 = sshll.u32 [#allocation2], 4
      %s260 = int_to_ptr.vmem [resolvable:$true] %s259
      %262 = dma.vmem_to_hbm [thread:$0]  %s260, 128, %s7, [#allocation3]
    $region33: #{autoencoder_forward.1} parent=1 // pred_fallthru
      _
    // Predicated region
    $region34: #{autoencoder_forward.1} parent=1 // pred_check
      _
    $region35: #{autoencoder_forward.1} parent=1 // pred_check_branch
      %264 = sbr.rel (0) target = $region37
    $region36: #{autoencoder_forward.1} parent=1 // pred_region
      %265 = dma.done [#allocation3], 128
    $region37: #{autoencoder_forward.1} parent=1 // pred_fallthru
      _
    %266 = vsyncpa [#allocation3], 1

</llo_original>
